<compile_context>
chip_gen: v7x
topology: tpu7x:2x2x1
jax: 0.10.0
libtpu: 0.0.40
codegen_flags: <defaults>
</compile_context>

<pallas_src>
import jax
import jax.numpy as jnp
from jax.experimental import pallas as pl
from jax.experimental.pallas import tpu as pltpu


# ----------------------------------------------------------------------------
# Kernels
# ----------------------------------------------------------------------------
def _make_conv1x1_sigmoid_kernel(bn: int):
    """Kernel for y = sigmoid(W @ x + b) on a (bn, C_in, TM) pixel tile."""

    def kernel(x_ref, w_ref, b_ref, o_ref):
        # x_ref: (bn, C_in, TM)   w_ref: (C_out, C_in)   b_ref: (C_out, 1)
        # o_ref: (bn, C_out, TM)
        w = w_ref[...]
        b = b_ref[...]
        # bn is small and static -> unrolled loop of plain 2D MXU dots.
        # (Memory-bound: the K=C_in contraction is negligible either way.)
        for i in range(bn):
            y = jnp.dot(w, x_ref[i], preferred_element_type=jnp.float32)
            o_ref[i] = jax.nn.sigmoid(y + b).astype(o_ref.dtype)

    return kernel


def _sigmoid_only_kernel(x_ref, o_ref):
    # Pure output-activation pass (tuple outputs of the inner model).
    o_ref[...] = jax.nn.sigmoid(x_ref[...].astype(jnp.float32)).astype(o_ref.dtype)


# ----------------------------------------------------------------------------
# Tiling / resource planning
# ----------------------------------------------------------------------------
_MAX_IMAGES_PER_STEP = 16  # bound on the unrolled in-kernel batch loop


def _pad8(c: int) -> int:
    return ((max(int(c), 1) + 7) // 8) * 8


def _vmem_limit_bytes() -> int:
    """Scoped VMEM limit: half of physical, capped at 64 MiB.

    v5e/v6e: 128 MiB physical -> 64 MiB; v7x: 64 MiB physical -> 32 MiB.
    Our tiles need ~16-17 MiB, so this keeps double-buffering intact on all
    generations without overshooting v7x's smaller VMEM.
    """
    try:
        cap = int(pltpu.get_tpu_info().vmem_capacity_bytes)
    except Exception:
        cap = 64 * 1024 * 1024  # conservative (v7x-sized) fallback
    return int(min(cap // 2, 64 * 1024 * 1024))


def _plan_conv_tiles(N, C_in, C_out, HW, target_step_bytes=8 << 20):
    """Pick (images-per-step bn, pixel-tile tm) so each grid step moves
    ~target_step_bytes of HBM traffic (input tile + output tile, with the
    channel dims padded to 8 sublanes)."""
    bytes_per_pixel = (_pad8(C_in) + _pad8(C_out)) * 4  # f32 in + out per lane
    target_pixels = max(128, target_step_bytes // bytes_per_pixel)

    if HW >= target_pixels:
        # Large image: one image per step, tile the pixel axis lane-dense.
        bn = 1
        tm = max(128, (target_pixels // 128) * 128)
    else:
        # Small image: take the full pixel extent and fold several batch
        # images into one grid step to recover per-step amortization.
        tm = HW
        bn = int(min(max(1, target_pixels // max(HW, 1)), N, _MAX_IMAGES_PER_STEP))
        if N >= 2:
            # Keep >= 2 "parallel" grid steps so v7x's two TensorCores both work.
            bn = min(bn, max(1, N // 2))

    # If the whole problem still collapses to a single grid step, split the
    # pixel axis in two (v7x megacore balance); partial trailing block is fine.
    if pl.cdiv(N, bn) * pl.cdiv(HW, tm) < 2 and HW >= 256:
        tm = max(128, ((pl.cdiv(HW, 2) + 127) // 128) * 128)

    return bn, tm


# ----------------------------------------------------------------------------
# Wrappers
# ----------------------------------------------------------------------------
def output_activation_module(x_nchw, w, b, out_dtype=None):
    """Forward pass of OutputActivationModule with a 1x1 Conv2d inner model:
        sigmoid(conv1x1(x)).

    x_nchw: (N, C_in, H, W)
    w:      (C_out, C_in)   (1x1 conv kernel, squeezed, torch layout)
    b:      (C_out,)
    out_dtype: optional narrower output dtype (e.g. jnp.bfloat16) — the output
        write is the dominant HBM traffic, so bf16 cuts ~1/3 of total bytes.
        Default None keeps the input dtype (exact module semantics).
    returns (N, C_out, H, W)
    """
    N, C_in, H, W = x_nchw.shape
    C_out = w.shape[0]
    HW = H * W
    out_dtype = x_nchw.dtype if out_dtype is None else out_dtype

    # Free reshapes only -- no transposes, pixels land on lanes.
    x3d = x_nchw.reshape(N, C_in, HW)
    b2d = b.reshape(C_out, 1)

    bn, tm = _plan_conv_tiles(N, C_in, C_out, HW)
    grid = (pl.cdiv(N, bn), pl.cdiv(HW, tm))

    out_bytes = jnp.dtype(out_dtype).itemsize
    cost = pl.CostEstimate(
        flops=2 * N * HW * C_in * C_out,
        transcendentals=2 * N * HW * C_out,  # sigmoid ~ exp + reciprocal
        bytes_accessed=(x3d.dtype.itemsize * N * HW * C_in
                        + out_bytes * N * HW * C_out
                        + 4 * (C_in * C_out + C_out)),
    )

    out3d = pl.pallas_call(
        _make_conv1x1_sigmoid_kernel(bn),
        out_shape=jax.ShapeDtypeStruct((N, C_out, HW), out_dtype),
        grid_spec=pltpu.PrefetchScalarGridSpec(
            num_scalar_prefetch=0,
            grid=grid,
            in_specs=[
                # (bn, C_in, tm) pixel tile of bn consecutive images.
                pl.BlockSpec((bn, C_in, tm), lambda n, m: (n, 0, m)),
                # Tiny weight / bias blocks, resident across the grid.
                pl.BlockSpec((C_out, C_in), lambda n, m: (0, 0)),
                pl.BlockSpec((C_out, 1), lambda n, m: (0, 0)),
            ],
            out_specs=pl.BlockSpec((bn, C_out, tm), lambda n, m: (n, 0, m)),
        ),
        compiler_params=pltpu.CompilerParams(
            dimension_semantics=("parallel", "parallel"),
            vmem_limit_bytes=_vmem_limit_bytes(),
            # NOTE: on v5e/v6e, pipeline_mode=pl.Buffered(3) on the x spec is a
            # cheap extra-headroom sweep for very short grids; skipped by
            # default to preserve v7x's smaller VMEM.
        ),
        cost_estimate=cost,
    )(x3d, w, b2d)

    # (N, C_out, H*W) -> (N, C_out, H, W): free reshape, still no transpose.
    return out3d.reshape(N, C_out, H, W)


def _sigmoid_pallas(t):
    """Tiled, lane-dense element-wise sigmoid for arbitrary-shaped tensors.

    The tensor is flattened, padded to a (rows, 1024) lane/sublane-dense slab,
    processed in ~4 MiB tiles, then sliced back — no single-block fallback.
    """
    orig_shape = t.shape
    total = int(t.size)
    if total == 0:
        return t

    COLS = 1024                              # multiple of 128 -> unmasked vst
    rows = -(-total // COLS)                 # ceil div
    rows = ((rows + 7) // 8) * 8             # full sublane tiles
    padded = rows * COLS

    flat = t.reshape(-1)
    if padded != total:
        flat = jnp.pad(flat, (0, padded - total))
    t2d = flat.reshape(rows, COLS)

    # ~4 MiB (f32) per grid step; split large-but-single-step cases in two so
    # both v7x TensorCores get work.
    tr = min(rows, 1024)
    if 512 <= rows <= 1024:
        tr = ((rows // 2 + 7) // 8) * 8
    grid_r = pl.cdiv(rows, tr)

    out2d = pl.pallas_call(
        _sigmoid_only_kernel,
        out_shape=jax.ShapeDtypeStruct((rows, COLS), t.dtype),
        grid=(grid_r,),
        in_specs=[pl.BlockSpec((tr, COLS), lambda i: (i, 0))],
        out_specs=pl.BlockSpec((tr, COLS), lambda i: (i, 0)),
        compiler_params=pltpu.CompilerParams(
            dimension_semantics=("parallel",),
            vmem_limit_bytes=_vmem_limit_bytes(),
        ),
    )(t2d)

    out_flat = out2d.reshape(-1)
    if padded != total:
        out_flat = out_flat[:total]
    return out_flat.reshape(orig_shape)


def apply_output_activation(out):
    """Mirror of OutputActivationModule.forward's tuple handling: if the inner
    model returns a tuple, apply the activation to each element."""
    # TODO(synk): the PyTorch module wraps an *arbitrary* inner model; only the
    # output-activation part is generic here (inner model shown as 1x1 conv).
    if isinstance(out, tuple):
        return tuple(_sigmoid_pallas(t) for t in out)
    return _sigmoid_pallas(out)


# ----------------------------------------------------------------------------
# Demo / correctness check
# ----------------------------------------------------------------------------
if __name__ == "__main__":
    key = jax.random.PRNGKey(0)
    kx, kw, kb = jax.random.split(key, 3)

    N, C_in, H, W = 2, 4, 16, 16
    C_out = 8

    x = jax.random.normal(kx, (N, C_in, H, W), dtype=jnp.float32)
    w = jax.random.normal(kw, (C_out, C_in), dtype=jnp.float32) * 0.1
    b = jax.random.normal(kb, (C_out,), dtype=jnp.float32) * 0.1

    # Fused path: inner 1x1-conv model + sigmoid output activation.
    out = output_activation_module(x, w, b)
    out = jax.block_until_ready(out)

    pre = jnp.einsum("nchw,oc->nohw", x, w) + b[None, :, None, None]
    ref = jax.nn.sigmoid(pre)
    assert out.shape == (N, C_out, H, W)
    assert jnp.allclose(out, ref, atol=1e-5), "mismatch vs reference (fused path)"

    # Tuple-output path of OutputActivationModule.forward (activation only).
    tup = apply_output_activation((pre, x))
    tup = jax.block_until_ready(tup)
    assert jnp.allclose(tup[0], ref, atol=1e-5), "mismatch vs reference (tuple[0])"
    assert jnp.allclose(tup[1], jax.nn.sigmoid(x), atol=1e-5), "mismatch (tuple[1])"

    print("KERNEL_OK")
</pallas_src>

<mosaic_0001>
module attributes {stable_mosaic.version = 11 : i64} {
  func.func @kernel(%arg0: i32, %arg1: i32, %arg2: memref<1x4x256xf32, #tpu.memory_space<vmem>>, %arg3: memref<8x4xf32, #tpu.memory_space<vmem>>, %arg4: memref<8x1xf32, #tpu.memory_space<vmem>>, %arg5: memref<1x8x256xf32, #tpu.memory_space<vmem>>) attributes {dimension_semantics = [#tpu.dimension_semantics<parallel>, #tpu.dimension_semantics<parallel>], iteration_bounds = array<i64: 2, 1>, scalar_prefetch = 0 : i64, scratch_operands = 0 : i64, tpu.core_type = #tpu.core_type<tc>, window_params = [{transform_indices = @transform_0, window_bounds = array<i64: 1, 4, 256>}, {pipeline_mode = #tpu.pipeline_mode<synchronous>, transform_indices = @transform_1, window_bounds = array<i64: 8, 4>}, {pipeline_mode = #tpu.pipeline_mode<synchronous>, transform_indices = @transform_2, window_bounds = array<i64: 8, 1>}, {transform_indices = @transform_3, window_bounds = array<i64: 1, 8, 256>}]} {
    %c0 = arith.constant 0 : index
    %c0_0 = arith.constant 0 : index
    %0 = vector.load %arg3[%c0, %c0_0] : memref<8x4xf32, #tpu.memory_space<vmem>>, vector<8x4xf32>
    %c0_1 = arith.constant 0 : index
    %c0_2 = arith.constant 0 : index
    %1 = vector.load %arg4[%c0_1, %c0_2] : memref<8x1xf32, #tpu.memory_space<vmem>>, vector<8x1xf32>
    %c0_3 = arith.constant 0 : index
    %c0_4 = arith.constant 0 : index
    %c0_5 = arith.constant 0 : index
    %2 = vector.load %arg2[%c0_3, %c0_4, %c0_5] : memref<1x4x256xf32, #tpu.memory_space<vmem>>, vector<1x4x256xf32>
    %3 = vector.shape_cast %2 : vector<1x4x256xf32> to vector<4x256xf32>
    %cst = arith.constant dense<0.000000e+00> : vector<8x256xf32>
    %4 = tpu.matmul %0, %3, %cst {dimension_numbers = #tpu.dot_dimension_numbers<[1], [0], [0], [1], [0, 0, 1, 1], [], []>} : vector<8x4xf32>, vector<4x256xf32>, vector<8x256xf32> -> vector<8x256xf32>
    %5 = vector.broadcast %1 : vector<8x1xf32> to vector<8x256xf32>
    %6 = arith.addf %4, %5 : vector<8x256xf32>
    %7 = arith.negf %6 : vector<8x256xf32>
    %8 = math.exp %7 : vector<8x256xf32>
    %cst_6 = arith.constant 1.000000e+00 : f32
    %9 = vector.broadcast %cst_6 : f32 to vector<8x256xf32>
    %10 = arith.addf %9, %8 : vector<8x256xf32>
    %11 = arith.divf %9, %10 : vector<8x256xf32>
    %c0_7 = arith.constant 0 : index
    %c0_8 = arith.constant 0 : index
    %c0_9 = arith.constant 0 : index
    %12 = vector.load %arg5[%c0_7, %c0_8, %c0_9] : memref<1x8x256xf32, #tpu.memory_space<vmem>>, vector<1x8x256xf32>
    %13 = vector.shape_cast %12 : vector<1x8x256xf32> to vector<8x256xf32>
    %14 = vector.shape_cast %11 : vector<8x256xf32> to vector<1x8x256xf32>
    tpu.vector_store %arg5[%c0_7, %c0_8, %c0_9], %14 {strides = array<i32>} : memref<1x8x256xf32, #tpu.memory_space<vmem>>, vector<1x8x256xf32>,
    return
  }
  func.func @transform_0(%arg0: i32, %arg1: i32) -> (i32, i32, i32) {
    %c0_i32 = arith.constant 0 : i32
    %c0_i32_0 = arith.constant 0 : i32
    return %arg0, %c0_i32, %arg1 : i32, i32, i32
  }
  func.func @transform_1(%arg0: i32, %arg1: i32) -> (i32, i32) {
    %c0_i32 = arith.constant 0 : i32
    %c0_i32_0 = arith.constant 0 : i32
    %c0_i32_1 = arith.constant 0 : i32
    return %c0_i32, %c0_i32_0 : i32, i32
  }
  func.func @transform_2(%arg0: i32, %arg1: i32) -> (i32, i32) {
    %c0_i32 = arith.constant 0 : i32
    %c0_i32_0 = arith.constant 0 : i32
    %c0_i32_1 = arith.constant 0 : i32
    return %c0_i32, %c0_i32_0 : i32, i32
  }
  func.func @transform_3(%arg0: i32, %arg1: i32) -> (i32, i32, i32) {
    %c0_i32 = arith.constant 0 : i32
    %c0_i32_0 = arith.constant 0 : i32
    return %arg0, %c0_i32, %arg1 : i32, i32, i32
  }
}

</mosaic_0001>

<llo_original>
// kernel: tpu_custom_call.1
$region0: #{tpu_custom_call.1}
  #allocation0 [shape = 'u32[]', space=smem, size = 0x4, offset = 0x4, fixed_abs, tag = 'smem constant byte address 0x4 - core index']
  #allocation1 [shape = 'u32[144,128]{1,0:T(1,128)}', space=vmem, size = 0x12000, scoped, tag = 'internal scratch']
  %s0 = inlined_call_operand.vmem [shape: f32[2,4,256], index: 0, kind: input, shape index: {}]
  %s1 = inlined_call_operand.vmem [shape: f32[8,4], index: 1, kind: input, shape index: {}]
  %s2 = inlined_call_operand.vmem [shape: f32[8,1], index: 2, kind: input, shape index: {}]
  %s3 = inlined_call_operand.hbm [shape: f32[2,8,256], index: 3, kind: output, shape index: {}]
  %s4 = sld [smem:[#allocation0]]
  $region45: #{tpu_custom_call.1} parent=0
    _
  %s6 = ssub.s32 1, %s4
  %s7 = scalar_select 0, %s6, %s4
  $region1: #{tpu_custom_call.1} parent=0
    #allocation2 [shape = 'u8[16384]{0}', space=vmem, size = 0x4000, scoped, tag = 'output window, operand 0']
    #allocation3 [shape = 's32[2]{0}', space=sflag, size = 0x8, scoped, tag = 'scoped memory for tpu_custom_call.1']
    %8 = vsyncpa [#allocation3], 0
    %s9 = scalar_lea.sflag [#allocation3], 1
    %10 = vsyncpa %s9, 0
    loop: start=0, step=1, limit=4
    $region2: #{tpu_custom_call.1} parent=1 // loop_pre_header
      _
    $region3: #{tpu_custom_call.1} parent=1 // loop_header
      %s12 = sphi 0, %s16
      %p13 = scmp.ge.s32.totalorder %s12, 4
      %s19 = sphi 0, %s31
      %s20 = sphi 0, %s27
      %s21 = sphi 0, %s19
      %s22 = sphi 0, %s20
      %s23 = sphi 0, %s21
      %s24 = sphi 0, %s22
      %s36 = sphi 0, %s38
      %s39 = sphi 0, %s36
      %s40 = sphi 0, %s39
      %s56 = sphi 0, %s40
      %s60 = sphi 0, %s60
      %s62 = sphi 0, %s60
      %s63 = sphi 0, %s62
      %s77 = sphi 0, %s63
      %s81 = sphi 0, %s81
      %s83 = sphi 0, %s81
      %s84 = sphi 0, %s83
      %s98 = sphi 0, %s84
      %s106 = sphi 0, %s108
      %s109 = sphi 0, %s106
      %s110 = sphi 0, %s109
      %s126 = sphi 0, %s110
    $region4: #{tpu_custom_call.1} parent=1 // loop_header_branch
      %15 = sbr.rel (%p13) target = $region8
    $region5: #{tpu_custom_call.1} parent=1 // loop_body
      %s17 = ssub.s32 %s12, 1
      %s18 = ssub.s32 %s12, 2
      %s25 = sadd.s32 1, %s20
      %p26 = scmp.ge.s32.totalorder %s25, 1
      %s27 = scalar_select %p26, 0, %s25
      %s28 = sadd.s32 1, %s19
      %s29 = scalar_select %p26, %s28, %s19
      %p30 = scmp.ge.s32.totalorder %s29, 2
      %s31 = scalar_select %p30, 0, %s29
      %s32 = ssub.s32 %s19, %s31
      %s33 = ssub.s32 %s20, %s27
      %s34 = sor.u32 %s32, %s33
      %p35 = scmp.eq.s32.totalorder %s34, 0
      %s37 = sadd.s32 %s36, 1
      %s38 = scalar_select %p35, %s36, %s37
      %p41 = pneg %p35
      %p42 = scmp.eq.s32.totalorder %s12, 1
      %p43 = por %p41, %p42
      %p44 = scmp.ne.s32.totalorder %s36, %s39
      %p45 = scmp.eq.s32.totalorder %s12, 0
      %p46 = por %p44, %p45
      %p47 = scmp.ne.s32.totalorder %s36, %s39
      %p48 = scmp.eq.s32.totalorder %s17, 1
      %p49 = por %p47, %p48
      %p50 = scmp.ne.s32.totalorder %s39, %s40
      %p51 = scmp.eq.s32.totalorder %s17, 0
      %p52 = por %p50, %p51
      %p53 = scmp.ne.s32.totalorder %s39, %s40
      %p54 = scmp.eq.s32.totalorder %s18, 1
      %p55 = por %p53, %p54
      %p57 = scmp.ne.s32.totalorder %s40, %s56
      %p58 = scmp.eq.s32.totalorder %s18, 0
      %p59 = por %p57, %p58
      %s61 = sadd.s32 %s60, 1
      %p64 = scmp.eq.s32.totalorder %s12, 1
      %p65 = scmp.ne.s32.totalorder %s60, %s62
      %p66 = scmp.eq.s32.totalorder %s12, 0
      %p67 = por %p65, %p66
      %p68 = scmp.ne.s32.totalorder %s60, %s62
      %p69 = scmp.eq.s32.totalorder %s17, 1
      %p70 = por %p68, %p69
      %p71 = scmp.ne.s32.totalorder %s62, %s63
      %p72 = scmp.eq.s32.totalorder %s17, 0
      %p73 = por %p71, %p72
      %p74 = scmp.ne.s32.totalorder %s62, %s63
      %p75 = scmp.eq.s32.totalorder %s18, 1
      %p76 = por %p74, %p75
      %p78 = scmp.ne.s32.totalorder %s63, %s77
      %p79 = scmp.eq.s32.totalorder %s18, 0
      %p80 = por %p78, %p79
      %s82 = sadd.s32 %s81, 1
      %p85 = scmp.eq.s32.totalorder %s12, 1
      %p86 = scmp.ne.s32.totalorder %s81, %s83
      %p87 = scmp.eq.s32.totalorder %s12, 0
      %p88 = por %p86, %p87
      %p89 = scmp.ne.s32.totalorder %s81, %s83
      %p90 = scmp.eq.s32.totalorder %s17, 1
      %p91 = por %p89, %p90
      %p92 = scmp.ne.s32.totalorder %s83, %s84
      %p93 = scmp.eq.s32.totalorder %s17, 0
      %p94 = por %p92, %p93
      %p95 = scmp.ne.s32.totalorder %s83, %s84
      %p96 = scmp.eq.s32.totalorder %s18, 1
      %p97 = por %p95, %p96
      %p99 = scmp.ne.s32.totalorder %s84, %s98
      %p100 = scmp.eq.s32.totalorder %s18, 0
      %p101 = por %p99, %p100
      %s102 = ssub.s32 %s19, %s31
      %s103 = ssub.s32 %s20, %s27
      %s104 = sor.u32 %s102, %s103
      %p105 = scmp.eq.s32.totalorder %s104, 0
      %s107 = sadd.s32 %s106, 1
      %s108 = scalar_select %p105, %s106, %s107
      %p111 = pneg %p105
      %p112 = scmp.eq.s32.totalorder %s12, 1
      %p113 = por %p111, %p112
      %p114 = scmp.ne.s32.totalorder %s106, %s109
      %p115 = scmp.eq.s32.totalorder %s12, 0
      %p116 = por %p114, %p115
      %p117 = scmp.ne.s32.totalorder %s106, %s109
      %p118 = scmp.eq.s32.totalorder %s17, 1
      %p119 = por %p117, %p118
      %p120 = scmp.ne.s32.totalorder %s109, %s110
      %p121 = scmp.eq.s32.totalorder %s17, 0
      %p122 = por %p120, %p121
      %p123 = scmp.ne.s32.totalorder %s109, %s110
      %p124 = scmp.eq.s32.totalorder %s18, 1
      %p125 = por %p123, %p124
      %p127 = scmp.ne.s32.totalorder %s110, %s126
      %p128 = scmp.eq.s32.totalorder %s18, 0
      %p129 = por %p127, %p128
      %p130 = scmp.le.s32.totalorder 1, %s12
      %p131 = scmp.lt.s32.totalorder %s12, 3
      %p132 = pnand %p130, %p131
      %p133 = pneg %p132
      // Predicated region
      $region9: #{tpu_custom_call.1} parent=5 // pred_check
        _
      $region10: #{tpu_custom_call.1} parent=5 // pred_check_branch
        %135 = sbr.rel (%p132) target = $region12
      $region11: #{tpu_custom_call.1} parent=5 // pred_region
        %s136 = ssub.s32 %s12, 1
        // Predicated region
        $region13: #{tpu_custom_call.1} parent=11 // pred_check
          %p137 = pneg %p73
        $region14: #{tpu_custom_call.1} parent=11 // pred_check_branch
          %139 = sbr.rel (%p137) target = $region16
        $region15: #{tpu_custom_call.1} parent=11 // pred_region
          _
        $region16: #{tpu_custom_call.1} parent=11 // pred_fallthru
          _
        // Predicated region
        $region17: #{tpu_custom_call.1} parent=11 // pred_check
          %p140 = pneg %p94
        $region18: #{tpu_custom_call.1} parent=11 // pred_check_branch
          %142 = sbr.rel (%p140) target = $region20
        $region19: #{tpu_custom_call.1} parent=11 // pred_region
          _
        $region20: #{tpu_custom_call.1} parent=11 // pred_fallthru
          _
      $region12: #{tpu_custom_call.1} parent=5 // pred_fallthru
        _
      %p143 = scmp.lt.s32.totalorder %s12, 2
      // Predicated region
      $region21: #{tpu_custom_call.1} parent=5 // pred_check
        %p144 = pneg %p143
      $region22: #{tpu_custom_call.1} parent=5 // pred_check_branch
        %146 = sbr.rel (%p144) target = $region24
      $region23: #{tpu_custom_call.1} parent=5 // pred_region
        // Predicated region
        $region25: #{tpu_custom_call.1} parent=23 // pred_check
          %p147 = pneg %p46
        $region26: #{tpu_custom_call.1} parent=23 // pred_check_branch
          %149 = sbr.rel (%p147) target = $region28
        $region27: #{tpu_custom_call.1} parent=23 // pred_region
          %s150 = smul.u32 2, %s20
          %p151 = scmp.lt.s32.totalorder %s19, 1
          %s152 = scalar_select %p151, %s19, 1
          %p153 = scmp.lt.s32.totalorder %s150, 1
          %s154 = scalar_select %p153, %s150, 1
          %s155 = smul.addr %s152, 2
          %s156 = sadd.s32 %s154, %s155
          %s157 = smul.addr %s156, 4
          %s158 = scalar_lea.vmem %s0, %s157
          %s159 = smul.u32 2, %s20
        $region28: #{tpu_custom_call.1} parent=23 // pred_fallthru
          _
      $region24: #{tpu_custom_call.1} parent=5 // pred_fallthru
        _
      %p160 = scmp.le.s32.totalorder 1, %s12
      %p161 = scmp.lt.s32.totalorder %s12, 3
      %p162 = pnand %p160, %p161
      %p163 = pneg %p162
      // Predicated region
      $region29: #{tpu_custom_call.1} parent=5 // pred_check
        _
      $region30: #{tpu_custom_call.1} parent=5 // pred_check_branch
        %165 = sbr.rel (%p162) target = $region32
      $region31: #{tpu_custom_call.1} parent=5 // pred_region
        %s166 = ssub.s32 %s12, 1
        %s167 = smul.u32 2, %s22
        %p168 = scmp.lt.s32.totalorder %s21, 1
        %s169 = scalar_select %p168, %s21, 1
        %p170 = scmp.lt.s32.totalorder %s167, 1
        %s171 = scalar_select %p170, %s167, 1
        %s172 = smul.addr %s169, 2
        %s173 = sadd.s32 %s171, %s172
        %s174 = smul.addr %s173, 4
        %s175 = scalar_lea.vmem %s0, %s174
        %p176 = pneg %p52
        %p177 = pneg %p49
        %p178 = pneg %p73
        %p179 = pneg %p70
        %p180 = pneg %p94
        %p181 = pneg %p91
        %p182 = pneg %p122
        %p183 = pneg %p119
        %s184 = sand.u32 %s109, 1
        %s185 = scalar_lea.sflag [#allocation3], %s184
        %s186 = sand.u32 %s109, 1
        %s187 = smul.addr %s186, 16
        %s188 = scalar_lea.vmem [#allocation2], %s187
        %s189 = smul.u32 2, %s22
        %p190 = scmp.lt.s32.totalorder %s21, 1
        %s191 = scalar_select %p190, %s21, 1
        %p192 = scmp.lt.s32.totalorder %s189, 1
        %s193 = scalar_select %p192, %s189, 1
        %s194 = smul.addr %s191, 2
        %s195 = sadd.s32 %s193, %s194
        %s196 = smul.addr %s195, 4
        %s197 = scalar_lea.vmem %s0, %s196
        %s198 = smul.u32 2, %s22
        %s199 = smul.u32 2, %s22
        %v200 = vld [vmem:[%s1] sm:$0xff]
        %v201 = vld [vmem:[%s2] sm:$0xff]
        %v202 = vld [vmem:[%s197] sm:$0xff]
        %204 = vset.pattern.permute.xlu0 0
        %205 = vperm.xlu0 %204, %v201
        %v206 = vpop.permute.xlu0 %205
        %v209 = vcombine.high %v202, %v202
        %vm210 = vcmask 31744
        %v212 = vsel %vm210, %v200, 0
        %vm214 = vcmask 1043456
        %v215 = vsel %vm214, %v202, 0
        %v217 = vsel %vm214, %v209, 0
        %219 = vmatprep.subr.mxu0 %v217
        %220 = vmatpush1.msra.mxu0 %v215
        %221 = vmatprep.subr.mxu0 0.0
        %222 = vmatpush1.msra.mxu0 0.0
        %223 = vmatprep.subr.mxu0 0.0
        %224 = vmatpush1.msra.mxu0 0.0
        %225 = vmatprep.subr.mxu0 0.0
        %226 = vmatpush1.msra.mxu0 0.0
        %227 = vmatprep.subr.mxu0 0.0
        %228 = vmatpush1.msra.mxu0 0.0
        %229 = vmatprep.subr.mxu0 0.0
        %230 = vmatpush1.msra.mxu0 0.0
        %231 = vmatprep.subr.mxu0 0.0
        %232 = vmatpush1.msra.mxu0 0.0
        %233 = vmatprep.subr.mxu0 0.0
        %234 = vmatpush1.msra.mxu0 0.0
        %235 = vmatprep.subr.mxu0 0.0
        %236 = vmatpush1.msra.mxu0 0.0
        %237 = vmatprep.subr.mxu0 0.0
        %238 = vmatpush1.msra.mxu0 0.0
        %239 = vmatprep.subr.mxu0 0.0
        %240 = vmatpush1.msra.mxu0 0.0
        %241 = vmatprep.subr.mxu0 0.0
        %242 = vmatpush1.msra.mxu0 0.0
        %243 = vmatprep.subr.mxu0 0.0
        %244 = vmatpush1.msra.mxu0 0.0
        %245 = vmatprep.subr.mxu0 0.0
        %246 = vmatpush1.msra.mxu0 0.0
        %247 = vmatprep.subr.mxu0 0.0
        %248 = vmatpush1.msra.mxu0 0.0
        %249 = vmatprep.subr.mxu0 0.0
        %250 = vmatpush1.msra.mxu0 0.0
        %251 = vmatprep.subr.mxu0 0.0
        %252 = vmatpush1.msra.mxu0 0.0
        %253 = vmatprep.subr.mxu0 0.0
        %254 = vmatpush1.msra.mxu0 0.0
        %255 = vmatprep.subr.mxu0 0.0
        %256 = vmatpush1.msra.mxu0 0.0
        %257 = vmatprep.subr.mxu0 0.0
        %258 = vmatpush1.msra.mxu0 0.0
        %259 = vmatprep.subr.mxu0 0.0
        %260 = vmatpush1.msra.mxu0 0.0
        %261 = vmatprep.subr.mxu0 0.0
        %262 = vmatpush1.msra.mxu0 0.0
        %263 = vmatprep.subr.mxu0 0.0
        %264 = vmatpush1.msra.mxu0 0.0
        %265 = vmatprep.subr.mxu0 0.0
        %266 = vmatpush1.msra.mxu0 0.0
        %267 = vmatprep.subr.mxu0 0.0
        %268 = vmatpush1.msra.mxu0 0.0
        %269 = vmatprep.subr.mxu0 0.0
        %270 = vmatpush1.msra.mxu0 0.0
        %271 = vmatprep.subr.mxu0 0.0
        %272 = vmatpush1.msra.mxu0 0.0
        %273 = vmatprep.subr.mxu0 0.0
        %274 = vmatpush1.msra.mxu0 0.0
        %275 = vmatprep.subr.mxu0 0.0
        %276 = vmatpush1.msra.mxu0 0.0
        %277 = vmatprep.subr.mxu0 0.0
        %278 = vmatpush1.msra.mxu0 0.0
        %279 = vmatprep.subr.mxu0 0.0
        %280 = vmatpush1.msra.mxu0 0.0
        %281 = vmatprep.subr.mxu0 0.0
        %282 = vmatpush1.msra.mxu0 0.0
        %283 = vmatprep.mubr.f32.mxu0 0.0
        %284 = vmatmul.mubr.f32.gmra.mrb[0].mxu0 %v212
        %v285 = vpop.f32.mrb[0].mxu0
        %v286 = vadd.f32 %v206, %v285
        %v287 = vpop.f32.mrb[0].mxu0
        %v288 = vadd.f32 %v206, %v287
        %289 = vdwg.mxu0
        %v290 = vxor.u32 %v286, 2147483648
        %v291 = vxor.u32 %v288, 2147483648
        %v292 = vmul.f32 %v290, 1.442695
        %v293 = vpow.pop %v292
        %v294 = vmul.f32 %v291, 1.442695
        %v295 = vpow.pop %v294
        %v296 = vadd.f32 %v293, 1.0
        %v297 = vadd.f32 %v295, 1.0
        %v298 = vrcp.pop %v296
        %v299 = vmul.f32 1.0, %v298
        %v300 = vrcp.pop %v297
        %v301 = vmul.f32 1.0, %v300
        %302 = vst [vmem:[%s188] sm:$0xff] %v299
        %303 = vst [vmem:[%s188 + $0x8] sm:$0xff] %v301
        %s304 = sand.u32 %s109, 1
        %s305 = scalar_lea.sflag [#allocation3], %s304
        %s306 = sand.u32 %s109, 1
        %s307 = smul.addr %s306, 16
        %s308 = scalar_lea.vmem [#allocation2], %s307
        // Predicated region
        $region33: #{tpu_custom_call.1} parent=31 // pred_check
          %p309 = pneg %p119
        $region34: #{tpu_custom_call.1} parent=31 // pred_check_branch
          %311 = sbr.rel (%p309) target = $region36
        $region35: #{tpu_custom_call.1} parent=31 // pred_region
          %s312 = smul.u32 2, %s22
          %s314 = ssub.s32 256, 256
          %315 = vsyncadd %s305, %s314
          %s316 = smul.addr %s21, 2
          %s317 = sadd.s32 %s312, %s316
          %s318 = smul.addr %s317, 128
          %s319 = scalar_lea.hbm %s3, %s318
          %s321 = sshll.u32 %s308, 4
          %s322 = int_to_ptr.vmem [resolvable:$true] %s321
          %324 = dma.vmem_to_hbm [thread:$0]  %s322, 256, %s319, %s305
        $region36: #{tpu_custom_call.1} parent=31 // pred_fallthru
          _
      $region32: #{tpu_custom_call.1} parent=5 // pred_fallthru
        _
      %p325 = scmp.le.s32.totalorder 2, %s12
      // Predicated region
      $region37: #{tpu_custom_call.1} parent=5 // pred_check
        %p326 = pneg %p325
      $region38: #{tpu_custom_call.1} parent=5 // pred_check_branch
        %328 = sbr.rel (%p326) target = $region40
      $region39: #{tpu_custom_call.1} parent=5 // pred_region
        %s329 = ssub.s32 %s12, 2
        // Predicated region
        $region41: #{tpu_custom_call.1} parent=39 // pred_check
          %p330 = pneg %p125
        $region42: #{tpu_custom_call.1} parent=39 // pred_check_branch
          %332 = sbr.rel (%p330) target = $region44
        $region43: #{tpu_custom_call.1} parent=39 // pred_region
          %s333 = sand.u32 %s110, 1
          %s334 = scalar_lea.sflag [#allocation3], %s333
          %s335 = sand.u32 %s110, 1
          %s336 = smul.addr %s335, 16
          %s337 = scalar_lea.vmem [#allocation2], %s336
          %338 = dma.done %s334, 256
        $region44: #{tpu_custom_call.1} parent=39 // pred_fallthru
          _
      $region40: #{tpu_custom_call.1} parent=5 // pred_fallthru
        _
    $region6: #{tpu_custom_call.1} parent=1 // loop_footer
      %s16 = sadd.s32 1, %s12
    $region7: #{tpu_custom_call.1} parent=1 // loop_footer_branch
      %11 = sbr.rel target = $region3
    $region8: #{tpu_custom_call.1} parent=1 // loop_exit
      _
    %339 = vsyncpa [#allocation3], 1
    %s340 = scalar_lea.sflag [#allocation3], 1
    %341 = vsyncpa %s340, 1

</llo_original>
